<compile_context>
chip_gen: v5e
topology: v5e:2x2
jax: 0.10.0
libtpu: 0.0.40
codegen_flags: <defaults>
</compile_context>

<pallas_src>
import math
from functools import partial

import jax
import jax.numpy as jnp
from jax.experimental import pallas as pl
from jax.experimental.pallas import tpu as pltpu  # noqa: F401  (kept for compiler_params at production sizes)


# Guard for the kron(I_T, theta) block-diagonal trick: keep K within one MXU
# depth (128 on v5e, 256 on v6e/v7x) so the padding zeros are actually free.
_MAX_BLOCKDIAG_K = 256


def _gcn_kernel_blockdiag(a_ref, theta_ref, x_ref, o_ref):
    # a_ref:     (B*N, B*N)       kron(I_B, A_hat), bf16 (default) or f32
    # theta_ref: (T*Cin, T*Cout)  kron(I_T, theta)
    # x_ref:     (B*N, T*Cin)     all batches, nodes on sublanes
    # o_ref:     (B*N, T*Cout)    lane-dense output slab (multiple of 128 lanes)
    y = jnp.dot(a_ref[...], x_ref[...],
                preferred_element_type=jnp.float32)            # node mixing (MXU)
    z = jnp.dot(y.astype(theta_ref.dtype), theta_ref[...],
                preferred_element_type=jnp.float32)            # channel proj (MXU)
    o_ref[...] = jnp.maximum(z, 0.0).astype(o_ref.dtype)       # ReLU (VPU)


def _gcn_kernel_loop_t(a_ref, theta_ref, x_ref, o_ref, *, T, Cin, Cout):
    # Fallback when T*Cin > MXU K depth: theta_ref is the plain (Cin, Cout)
    # weight; project each time step separately (static loop, T known at trace
    # time) and assemble one lane-dense slab before the single store.
    y = jnp.dot(a_ref[...], x_ref[...],
                preferred_element_type=jnp.float32)            # node mixing (MXU)
    zs = []
    for t in range(T):
        yt = y[:, t * Cin:(t + 1) * Cin].astype(theta_ref.dtype)
        zs.append(jnp.dot(yt, theta_ref[...],
                          preferred_element_type=jnp.float32))
    z = jnp.concatenate(zs, axis=-1)                           # (B*N, T*Cout)
    o_ref[...] = jnp.maximum(z, 0.0).astype(o_ref.dtype)


def prepare_gcn_params(A_hat, theta, *, batch, time_steps,
                       compute_dtype=jnp.bfloat16,
                       max_blockdiag_k=_MAX_BLOCKDIAG_K):
    """Hoisted parameter prep. Call ONCE and reuse across GCN/ODE evaluations.

    Builds the block-diagonal operators and casts them to the MXU compute
    dtype (bf16 by default; f32 accumulation happens in-kernel regardless).
    """
    N = A_hat.shape[0]
    Cin, Cout = theta.shape
    B, T = batch, time_steps

    # Batch folded into the matmul M dimension (B*N rows).  Zeros pad into the
    # same MXU pass while B*N stays small; tile N instead for large graphs.
    A_bd = jnp.kron(jnp.eye(B, dtype=A_hat.dtype), A_hat)          # (B*N, B*N)

    use_block_diag = (T * Cin) <= max_blockdiag_k
    if use_block_diag:
        # Fold time into the projection: one (B*N,T*Cin)@(T*Cin,T*Cout) matmul
        # with a lane-dense (T*Cout) output.
        theta_p = jnp.kron(jnp.eye(T, dtype=theta.dtype), theta)   # (T*Cin, T*Cout)
    else:
        theta_p = theta                                            # (Cin, Cout)

    return dict(
        A_bd=A_bd.astype(compute_dtype),
        theta_p=theta_p.astype(compute_dtype),
        compute_dtype=compute_dtype,
        use_block_diag=use_block_diag,
        B=B, N=N, T=T, Cin=Cin, Cout=Cout,
    )


def gcn_apply(params, X, *, out_dtype=None):
    """X: (B, N, T, Cin) -> (B, N, T, Cout), matching PyTorch GCN.forward.

    out_dtype defaults to the compute dtype (bf16): the output is 8x larger
    than the input, so halving store bytes is the main memory-traffic win.
    """
    B, N, T, Cin = X.shape
    Cout = params["Cout"]
    assert (B, N, T, Cin) == (params["B"], params["N"], params["T"], params["Cin"]), \
        "X shape does not match prepared params"
    if out_dtype is None:
        out_dtype = params["compute_dtype"]

    x_flat = X.reshape(B * N, T * Cin).astype(params["compute_dtype"])  # free merge

    if params["use_block_diag"]:
        kernel = _gcn_kernel_blockdiag
    else:
        kernel = partial(_gcn_kernel_loop_t, T=T, Cin=Cin, Cout=Cout)

    # Single step, whole operands resident in VMEM (total footprint ~100 KiB at
    # these shapes, far below even v7x's 64 MiB) -> no grid, no per-step DMAs.
    out_flat = pl.pallas_call(
        kernel,
        out_shape=jax.ShapeDtypeStruct((B * N, T * Cout), out_dtype),
    )(params["A_bd"], params["theta_p"], x_flat)

    return out_flat.reshape(B, N, T, Cout)                      # free contiguous split


def gcn_forward(A_hat, theta, X, *, compute_dtype=jnp.bfloat16, out_dtype=None):
    """Convenience one-shot wrapper (prep + apply). Prefer prepare_gcn_params
    + gcn_apply when calling the GCN repeatedly (as STGODE's ODE func does)."""
    B, _, T, _ = X.shape
    params = prepare_gcn_params(A_hat, theta, batch=B, time_steps=T,
                                compute_dtype=compute_dtype)
    return gcn_apply(params, X, out_dtype=out_dtype)


def reference_forward(A_hat, theta, X):
    y = jnp.einsum('ij,kjlm->kilm', A_hat, X)
    return jax.nn.relu(jnp.einsum('kjlm,mn->kjln', y, theta))


if __name__ == "__main__":
    # Small shapes consistent with the module: batch=2, nodes=16, time=8,
    # in_channels=4, out_channels=32.
    B, N, T, Cin, Cout = 2, 16, 8, 4, 32

    key = jax.random.PRNGKey(0)
    k_a, k_theta, k_x = jax.random.split(key, 3)

    # Deterministic "normalized adjacency"-like operator A_hat (N, N).
    A_raw = jnp.abs(jax.random.normal(k_a, (N, N), dtype=jnp.float32)) \
            + jnp.eye(N, dtype=jnp.float32)
    A_hat = A_raw / jnp.sum(A_raw, axis=1, keepdims=True)

    # theta ~ U(-stdv, stdv), stdv = 1/sqrt(out_channels), as in GCN.reset().
    stdv = 1.0 / math.sqrt(Cout)
    theta = jax.random.uniform(k_theta, (Cin, Cout), dtype=jnp.float32,
                               minval=-stdv, maxval=stdv)

    X = jax.random.normal(k_x, (B, N, T, Cin), dtype=jnp.float32)

    ref = reference_forward(A_hat, theta, X)

    # 1) Default fast path: bf16 operands + bf16 output, f32 MXU accumulation.
    params_bf16 = prepare_gcn_params(A_hat, theta, batch=B, time_steps=T)
    out_bf16 = jax.block_until_ready(gcn_apply(params_bf16, X))
    assert out_bf16.shape == (B, N, T, Cout)
    assert out_bf16.dtype == jnp.bfloat16
    assert jnp.allclose(out_bf16.astype(jnp.float32), ref, atol=3e-2, rtol=3e-2)

    # 2) f32 exact-semantics path (matches the PyTorch reference tightly).
    params_f32 = prepare_gcn_params(A_hat, theta, batch=B, time_steps=T,
                                    compute_dtype=jnp.float32)
    out_f32 = jax.block_until_ready(gcn_apply(params_f32, X, out_dtype=jnp.float32))
    assert out_f32.shape == (B, N, T, Cout)
    assert jnp.allclose(out_f32, ref, atol=1e-5, rtol=1e-5)

    # 3) Scaling-guard fallback (forced): per-time-step projection kernel used
    #    when T*Cin would exceed the MXU K depth; verified exact in f32.
    params_loop = prepare_gcn_params(A_hat, theta, batch=B, time_steps=T,
                                     compute_dtype=jnp.float32,
                                     max_blockdiag_k=0)
    out_loop = jax.block_until_ready(gcn_apply(params_loop, X, out_dtype=jnp.float32))
    assert jnp.allclose(out_loop, ref, atol=1e-5, rtol=1e-5)

    print("KERNEL_OK")
</pallas_src>

<mosaic_0001>
module attributes {stable_mosaic.version = 11 : i64} {
  func.func @_gcn_kernel_blockdiag(%arg0: memref<32x32xbf16, #tpu.memory_space<vmem>>, %arg1: memref<32x256xbf16, #tpu.memory_space<vmem>>, %arg2: memref<32x32xbf16, #tpu.memory_space<vmem>>, %arg3: memref<32x256xbf16, #tpu.memory_space<vmem>>) attributes {dimension_semantics = [], scalar_prefetch = 0 : i64, scratch_operands = 0 : i64, tpu.core_type = #tpu.core_type<tc>} {
    %c0 = arith.constant 0 : index
    %c0_0 = arith.constant 0 : index
    %0 = vector.load %arg0[%c0, %c0_0] : memref<32x32xbf16, #tpu.memory_space<vmem>>, vector<32x32xbf16>
    %c0_1 = arith.constant 0 : index
    %c0_2 = arith.constant 0 : index
    %1 = vector.load %arg2[%c0_1, %c0_2] : memref<32x32xbf16, #tpu.memory_space<vmem>>, vector<32x32xbf16>
    %cst = arith.constant dense<0.000000e+00> : vector<32x32xf32>
    %2 = tpu.matmul %0, %1, %cst {dimension_numbers = #tpu.dot_dimension_numbers<[1], [0], [0], [1], [0, 0, 1, 1], [], []>} : vector<32x32xbf16>, vector<32x32xbf16>, vector<32x32xf32> -> vector<32x32xf32>
    %3 = arith.truncf %2 : vector<32x32xf32> to vector<32x32xbf16>
    %c0_3 = arith.constant 0 : index
    %c0_4 = arith.constant 0 : index
    %4 = vector.load %arg1[%c0_3, %c0_4] : memref<32x256xbf16, #tpu.memory_space<vmem>>, vector<32x256xbf16>
    %cst_5 = arith.constant dense<0.000000e+00> : vector<32x256xf32>
    %5 = tpu.matmul %3, %4, %cst_5 {dimension_numbers = #tpu.dot_dimension_numbers<[1], [0], [0], [1], [0, 0, 1, 1], [], []>} : vector<32x32xbf16>, vector<32x256xbf16>, vector<32x256xf32> -> vector<32x256xf32>
    %cst_6 = arith.constant 0.000000e+00 : f32
    %6 = vector.broadcast %cst_6 : f32 to vector<32x256xf32>
    %7 = arith.maximumf %5, %6 : vector<32x256xf32>
    %8 = arith.truncf %7 : vector<32x256xf32> to vector<32x256xbf16>
    %c0_7 = arith.constant 0 : index
    %c0_8 = arith.constant 0 : index
    %9 = vector.load %arg3[%c0_7, %c0_8] : memref<32x256xbf16, #tpu.memory_space<vmem>>, vector<32x256xbf16>
    tpu.vector_store %arg3[%c0_7, %c0_8], %8 {strides = array<i32>} : memref<32x256xbf16, #tpu.memory_space<vmem>>, vector<32x256xbf16>,
    return
  }
}

</mosaic_0001>

<llo_original>
// kernel: tpu_custom_call.1
$region0: #{tpu_custom_call.1}
  #allocation0 [shape = 'u32[]', space=smem, size = 0x4, offset = 0x4, fixed_abs, tag = 'smem constant byte address 0x4 - core index']
  #allocation1 [shape = 'u32[72,128]{1,0:T(1,128)}', space=vmem, size = 0x9000, scoped, tag = 'internal scratch']
  %s0 = inlined_call_operand.hbm [shape: bf16[32,32], index: 0, kind: input, shape index: {}]
  %s1 = inlined_call_operand.hbm [shape: bf16[32,256], index: 1, kind: input, shape index: {}]
  %s2 = inlined_call_operand.hbm [shape: bf16[32,32], index: 2, kind: input, shape index: {}]
  %s3 = inlined_call_operand.hbm [shape: bf16[32,256], index: 3, kind: output, shape index: {}]
  %s4 = sld [smem:[#allocation0]]
  $region34: #{tpu_custom_call.1} parent=0
    _
  %s6 = ssub.s32 1, %s4
  %s7 = scalar_select 0, %s6, %s4
  $region1: #{tpu_custom_call.1} parent=0
    #allocation2 [shape = 'u8[8192]{0}', space=vmem, size = 0x2000, scoped, tag = 'input window, operand 0, single buffered']
    #allocation3 [shape = 's32[1]{0}', space=sflag, size = 0x4, scoped, tag = 'scoped memory for tpu_custom_call.1']
    #allocation4 [shape = 's32[1]{0}', space=sflag, size = 0x4, scoped, tag = 'scoped memory for tpu_custom_call.1']
    #allocation5 [shape = 'u8[16384]{0}', space=vmem, size = 0x4000, scoped, tag = 'input window, operand 1, single buffered']
    #allocation6 [shape = 's32[1]{0}', space=sflag, size = 0x4, scoped, tag = 'scoped memory for tpu_custom_call.1']
    #allocation7 [shape = 'u8[8192]{0}', space=vmem, size = 0x2000, scoped, tag = 'input window, operand 2, single buffered']
    #allocation8 [shape = 'u8[16384]{0}', space=vmem, size = 0x4000, scoped, tag = 'output window, operand 0, single buffered']
    %8 = vsyncpa [#allocation3], 0
    %9 = vsyncpa [#allocation6], 0
    %10 = vsyncpa [#allocation4], 0
    // Predicated region
    $region2: #{tpu_custom_call.1} parent=1 // pred_check
      _
    $region3: #{tpu_custom_call.1} parent=1 // pred_check_branch
      %12 = sbr.rel (0) target = $region5
    $region4: #{tpu_custom_call.1} parent=1 // pred_region
      %14 = vsyncadd [#allocation3], 0
      %s15 = sshll.u32 %s0, 4
      %s16 = int_to_ptr.hbm [resolvable:$true] %s15
      %s17 = sshll.u32 [#allocation2], 4
      %s18 = int_to_ptr.vmem [resolvable:$true] %s17
      %23 = dma.hbm_to_vmem [thread:$0]  %s16, 256, %s18, [#allocation3], 64, 64, 4
    $region5: #{tpu_custom_call.1} parent=1 // pred_fallthru
      _
    // Predicated region
    $region6: #{tpu_custom_call.1} parent=1 // pred_check
      _
    $region7: #{tpu_custom_call.1} parent=1 // pred_check_branch
      %25 = sbr.rel (0) target = $region9
    $region8: #{tpu_custom_call.1} parent=1 // pred_region
      %27 = vsyncadd [#allocation6], 0
      %s28 = sshll.u32 %s1, 4
      %s29 = int_to_ptr.hbm [resolvable:$true] %s28
      %s30 = sshll.u32 [#allocation5], 4
      %s31 = int_to_ptr.vmem [resolvable:$true] %s30
      %36 = dma.hbm_to_vmem [thread:$0]  %s29, 512, %s31, [#allocation6], 128, 128, 8
    $region9: #{tpu_custom_call.1} parent=1 // pred_fallthru
      _
    // Predicated region
    $region10: #{tpu_custom_call.1} parent=1 // pred_check
      _
    $region11: #{tpu_custom_call.1} parent=1 // pred_check_branch
      %38 = sbr.rel (0) target = $region13
    $region12: #{tpu_custom_call.1} parent=1 // pred_region
      %40 = vsyncadd [#allocation6], 0
      %s41 = sshll.u32 %s2, 4
      %s42 = int_to_ptr.hbm [resolvable:$true] %s41
      %s43 = sshll.u32 [#allocation7], 4
      %s44 = int_to_ptr.vmem [resolvable:$true] %s43
      %49 = dma.hbm_to_vmem [thread:$0]  %s42, 256, %s44, [#allocation6], 64, 64, 4
    $region13: #{tpu_custom_call.1} parent=1 // pred_fallthru
      _
    // Predicated region
    $region14: #{tpu_custom_call.1} parent=1 // pred_check
      _
    $region15: #{tpu_custom_call.1} parent=1 // pred_check_branch
      %51 = sbr.rel (0) target = $region17
    $region16: #{tpu_custom_call.1} parent=1 // pred_region
      %53 = dma.done [#allocation3], 256
    $region17: #{tpu_custom_call.1} parent=1 // pred_fallthru
      _
    // Predicated region
    $region18: #{tpu_custom_call.1} parent=1 // pred_check
      _
    $region19: #{tpu_custom_call.1} parent=1 // pred_check_branch
      %55 = sbr.rel (0) target = $region21
    $region20: #{tpu_custom_call.1} parent=1 // pred_region
      %57 = dma.done [#allocation6], 512
    $region21: #{tpu_custom_call.1} parent=1 // pred_fallthru
      _
    // Predicated region
    $region22: #{tpu_custom_call.1} parent=1 // pred_check
      _
    $region23: #{tpu_custom_call.1} parent=1 // pred_check_branch
      %59 = sbr.rel (0) target = $region25
    $region24: #{tpu_custom_call.1} parent=1 // pred_region
      %61 = dma.done [#allocation6], 256
    $region25: #{tpu_custom_call.1} parent=1 // pred_fallthru
      _
    %v63 = vld [vmem:[#allocation2] sm:$0xf]
    %v64 = vld [vmem:[#allocation2 + $0x4] sm:$0xf]
    %v65 = vld [vmem:[#allocation2 + $0x8] sm:$0xf]
    %v66 = vld [vmem:[#allocation2 + $0xc] sm:$0xf]
    %v67 = vld [vmem:[#allocation7] sm:$0xf]
    %v68 = vld [vmem:[#allocation7 + $0x4] sm:$0xf]
    %v69 = vld [vmem:[#allocation7 + $0x8] sm:$0xf]
    %v70 = vld [vmem:[#allocation7 + $0xc] sm:$0xf]
    %v75 = vunpack.c.l.b16 %v63
    %v76 = vunpack.c.l.b16 %v64
    %v77 = vunpack.c.l.b16 %v65
    %v78 = vunpack.c.l.b16 %v66
    %v79 = vpack.c.b16 %v76, %v75
    %v80 = vpack.c.b16 %v78, %v77
    %v85 = vunpack.c.l.b16 %v67
    %v86 = vunpack.c.l.b16 %v68
    %v87 = vunpack.c.l.b16 %v69
    %v88 = vunpack.c.l.b16 %v70
    %v89 = vpack.c.b16 %v86, %v85
    %v90 = vpack.c.b16 %v88, %v87
    %vm93 = vcmask 261120
    %v95 = vsel %vm93, %v79, 0
    %v98 = vsel %vm93, %v80, 0
    %100 = vmatpush.bf16.msra.mxu0 0
    %101 = vmatpush.bf16.msra.mxu0 0
    %102 = vmatpush.bf16.msra.mxu0 0
    %103 = vmatpush.bf16.msra.mxu0 0
    %104 = vmatpush.bf16.msra.mxu0 0
    %105 = vmatpush.bf16.msra.mxu0 0
    %106 = vmatpush.bf16.msra.mxu0 %v90
    %107 = vmatpush.bf16.msra.mxu0 %v89
    %108 = vmatmul.bf16.gmra.mxu0 %v95
    %v109 = vpop.f32.mrf.mxu0
    %v110 = vadd.f32 0.0, %v109
    %v111 = vpop.f32.mrf.mxu0
    %v112 = vadd.f32 0.0, %v111
    %113 = vmatmul.bf16.gmra.mxu0 %v98
    %v114 = vpop.f32.mrf.mxu0
    %v115 = vadd.f32 0.0, %v114
    %v116 = vpop.f32.mrf.mxu0
    %v117 = vadd.f32 0.0, %v116
    %118 = vdwg.mxu0
    %v119 = vpack.c.bf16 %v112, %v110
    %v120 = vpack.c.bf16 %v117, %v115
    %v121 = vld [vmem:[#allocation5] sm:$0xff]
    %v122 = vld [vmem:[#allocation5 + $0x8] sm:$0xff]
    %v123 = vld [vmem:[#allocation5 + $0x10] sm:$0xff]
    %v124 = vld [vmem:[#allocation5 + $0x18] sm:$0xff]
    %v129 = vunpack.c.l.b16 %v121
    %v130 = vunpack.c.h.b16 %v121
    %v131 = vunpack.c.l.b16 %v122
    %v132 = vunpack.c.h.b16 %v122
    %v133 = vunpack.c.l.b16 %v123
    %v134 = vunpack.c.h.b16 %v123
    %v135 = vunpack.c.l.b16 %v124
    %v136 = vunpack.c.h.b16 %v124
    %v137 = vpack.c.b16 %v131, %v129
    %v138 = vpack.c.b16 %v132, %v130
    %v139 = vpack.c.b16 %v135, %v133
    %v140 = vpack.c.b16 %v136, %v134
    %v146 = vsel %vm93, %v119, 0
    %v149 = vsel %vm93, %v120, 0
    %151 = vmatpush.bf16.msra.mxu0 0
    %152 = vmatpush.bf16.msra.mxu0 0
    %153 = vmatpush.bf16.msra.mxu0 0
    %154 = vmatpush.bf16.msra.mxu0 0
    %155 = vmatpush.bf16.msra.mxu0 0
    %156 = vmatpush.bf16.msra.mxu0 0
    %157 = vmatpush.bf16.msra.mxu0 %v139
    %158 = vmatpush.bf16.msra.mxu0 %v137
    %159 = vmatmul.bf16.gmra.mxu0 %v146
    %v160 = vpop.f32.mrf.mxu0
    %v161 = vadd.f32 0.0, %v160
    %v162 = vpop.f32.mrf.mxu0
    %v163 = vadd.f32 0.0, %v162
    %164 = vmatmul.bf16.gmra.mxu0 %v149
    %v165 = vpop.f32.mrf.mxu0
    %v166 = vadd.f32 0.0, %v165
    %v167 = vpop.f32.mrf.mxu0
    %v168 = vadd.f32 0.0, %v167
    %169 = vdwg.mxu0
    %170 = vmatpush.bf16.msra.mxu0 0
    %171 = vmatpush.bf16.msra.mxu0 0
    %172 = vmatpush.bf16.msra.mxu0 0
    %173 = vmatpush.bf16.msra.mxu0 0
    %174 = vmatpush.bf16.msra.mxu0 0
    %175 = vmatpush.bf16.msra.mxu0 0
    %176 = vmatpush.bf16.msra.mxu0 %v140
    %177 = vmatpush.bf16.msra.mxu0 %v138
    %178 = vmatmul.bf16.gmra.mxu0 %v146
    %v179 = vpop.f32.mrf.mxu0
    %v180 = vadd.f32 0.0, %v179
    %v181 = vpop.f32.mrf.mxu0
    %v182 = vadd.f32 0.0, %v181
    %183 = vmatmul.bf16.gmra.mxu0 %v149
    %v184 = vpop.f32.mrf.mxu0
    %v185 = vadd.f32 0.0, %v184
    %v186 = vpop.f32.mrf.mxu0
    %v187 = vadd.f32 0.0, %v186
    %188 = vdwg.mxu0
    %v189 = vmax.f32 %v161, 0.0
    %v190 = vmax.f32 %v180, 0.0
    %v191 = vmax.f32 %v163, 0.0
    %v192 = vmax.f32 %v182, 0.0
    %v193 = vmax.f32 %v166, 0.0
    %v194 = vmax.f32 %v185, 0.0
    %v195 = vmax.f32 %v168, 0.0
    %v196 = vmax.f32 %v187, 0.0
    %v197 = vpack.c.bf16 %v190, %v189
    %v198 = vpack.c.bf16 %v192, %v191
    %v199 = vpack.c.bf16 %v194, %v193
    %v200 = vpack.c.bf16 %v196, %v195
    %201 = vst [vmem:[#allocation8] sm:$0xff] %v197
    %202 = vst [vmem:[#allocation8 + $0x8] sm:$0xff] %v198
    %203 = vst [vmem:[#allocation8 + $0x10] sm:$0xff] %v199
    %204 = vst [vmem:[#allocation8 + $0x18] sm:$0xff] %v200
    // Predicated region
    $region26: #{tpu_custom_call.1} parent=1 // pred_check
      _
    $region27: #{tpu_custom_call.1} parent=1 // pred_check_branch
      %206 = sbr.rel (0) target = $region29
    $region28: #{tpu_custom_call.1} parent=1 // pred_region
      %208 = vsyncadd [#allocation4], 0
      %s209 = sshll.u32 [#allocation8], 4
      %s210 = int_to_ptr.vmem [resolvable:$true] %s209
      %s211 = sshll.u32 %s3, 4
      %s212 = int_to_ptr.hbm [resolvable:$true] %s211
      %217 = dma.vmem_to_hbm [thread:$0]  %s210, 512, %s212, [#allocation4], 128, 128, 8
    $region29: #{tpu_custom_call.1} parent=1 // pred_fallthru
      _
    // Predicated region
    $region30: #{tpu_custom_call.1} parent=1 // pred_check
      _
    $region31: #{tpu_custom_call.1} parent=1 // pred_check_branch
      %219 = sbr.rel (0) target = $region33
    $region32: #{tpu_custom_call.1} parent=1 // pred_region
      %221 = dma.done [#allocation4], 512
    $region33: #{tpu_custom_call.1} parent=1 // pred_fallthru
      _
    %222 = vsyncpa [#allocation3], 1
    %223 = vsyncpa [#allocation6], 1
    %224 = vsyncpa [#allocation4], 1

</llo_original>
